<compile_context>
chip_gen: v7x
topology: tpu7x:2x2x1
jax: 0.10.0
libtpu: 0.0.40
codegen_flags: <defaults>
</compile_context>

<pallas_src>
import math

import jax
import jax.numpy as jnp
from jax.experimental import pallas as pl
from jax.experimental.pallas import tpu as pltpu


def _scaled_swiglu_kernel(gate_ref, up_ref, out_ref, scale_ref):
    # Row-wise abs-max in the storage dtype (abs/max are exact in bf16/f32),
    # so the reduce pass runs on packed native vregs.
    up_native = up_ref[...]
    scale = jnp.max(jnp.abs(up_native), axis=-1, keepdims=True)        # (tm, 1), XLU reduce

    # Reciprocal on the (tm, 1) column only (not the full tile), then broadcast-multiply.
    inv = 1.0 / jnp.maximum(scale.astype(jnp.float32), 1e-12)          # clamp(min=1e-12)

    gate = gate_ref[...].astype(jnp.float32)
    # silu(x) = x * sigmoid(x); sigmoid via a single tanh EUP op.
    silu = gate * (0.5 * jnp.tanh(0.5 * gate) + 0.5)

    out = silu * (up_native.astype(jnp.float32) * inv)

    out_ref[...] = out.astype(out_ref.dtype)
    scale_ref[...] = scale.astype(scale_ref.dtype)                     # unclamped, as in torch


def scaled_swiglu(gate_proj: jax.Array, up_proj: jax.Array,
                  *, target_block_bytes: int | None = None,
                  vmem_limit_bytes: int | None = None):
    """Forward of ScaledSwiglu (default, non-delayed path).

    Returns (silu(gate_proj) * up_proj / clamp(amax(|up_proj|, -1), 1e-12), scale).
    """
    assert gate_proj.shape == up_proj.shape, "gate_proj and up_proj must have the same shape"
    orig_shape = gate_proj.shape
    H = orig_shape[-1]
    rows = math.prod(orig_shape[:-1]) if len(orig_shape) > 1 else 1

    out_dtype = jnp.result_type(gate_proj.dtype, up_proj.dtype)
    scale_dtype = up_proj.dtype

    g2 = gate_proj.reshape(rows, H)
    u2 = up_proj.reshape(rows, H)

    # --- Generation-aware budgets: smaller blocks / VMEM limit on v7x (64 MiB VMEM),
    # larger on v5e/v6e (128 MiB VMEM).  Elementwise kernels hit ~85% of HBM roofline
    # well below these block sizes, so the smaller v7x budget costs nothing.
    try:
        vmem_cap = getattr(pltpu.get_tpu_info(), "vmem_capacity_bytes", 128 << 20)
    except Exception:  # pragma: no cover - non-TPU tracing fallback
        vmem_cap = 128 << 20
    small_vmem = vmem_cap <= (64 << 20)
    if target_block_bytes is None:
        target_block_bytes = (4 << 20) if small_vmem else (8 << 20)
    if vmem_limit_bytes is None:
        vmem_limit_bytes = (32 << 20) if small_vmem else (48 << 20)

    # --- Tile-size selection: biggest row tile whose combined in+out block fits the budget.
    itemsizes = (jnp.dtype(g2.dtype).itemsize,
                 jnp.dtype(u2.dtype).itemsize,
                 jnp.dtype(out_dtype).itemsize)
    bytes_per_row = H * sum(itemsizes) + jnp.dtype(scale_dtype).itemsize
    tm = max(1, target_block_bytes // max(bytes_per_row, 1))

    # Sublane pack of the narrowest I/O dtype: 8 rows/vreg f32, 16 bf16, 32 int8/fp8.
    pack = 8 * (4 // min(itemsizes))
    if rows <= tm or rows <= pack:
        tm = rows                        # single full-extent block (satisfies block rules)
    else:
        tm = max(pack, (tm // pack) * pack)

    # Ragged last tile handled by Pallas (OOB reads unspecified, OOB writes discarded);
    # the row-wise reduction keeps garbage rows from contaminating valid rows, and the
    # 1e-12 clamp keeps the discarded rows finite-free of 0/0.
    grid = (pl.cdiv(rows, tm),)

    out2, scale2 = pl.pallas_call(
        _scaled_swiglu_kernel,
        out_shape=(
            jax.ShapeDtypeStruct((rows, H), out_dtype),
            jax.ShapeDtypeStruct((rows, 1), scale_dtype),
        ),
        grid_spec=pltpu.PrefetchScalarGridSpec(
            num_scalar_prefetch=0,
            grid=grid,
            in_specs=[
                pl.BlockSpec((tm, H), lambda i: (i, 0)),
                pl.BlockSpec((tm, H), lambda i: (i, 0)),
            ],
            out_specs=[
                pl.BlockSpec((tm, H), lambda i: (i, 0)),
                pl.BlockSpec((tm, 1), lambda i: (i, 0)),
            ],
        ),
        compiler_params=pltpu.CompilerParams(
            # Independent row tiles; shards the grid across TensorCores on v7x.
            # TODO(synk): verify on a v7x trace that both TCs are busy; if not, switch
            # this axis to pltpu.CORE_PARALLEL.
            dimension_semantics=("parallel",),
            vmem_limit_bytes=vmem_limit_bytes,
        ),
    )(g2, u2)

    out = out2.reshape(orig_shape)
    scale = scale2.reshape(orig_shape[:-1] + (1,))
    return out, scale


class ScaledSwigluJax:
    """Mirror of the PyTorch ScaledSwiglu module (forward, default path)."""

    def __init__(self, delayed: bool = False):
        self.delayed = delayed
        self.scale = jnp.asarray(1.0, dtype=jnp.float32)
        # TODO(synk): the `delayed` running-max scale buffer update and the
        # DETACH_SCALED_SWIGLU env-var path only differ in autograd/state handling;
        # the forward math kernelized here is the default (non-delayed) path.

    def __call__(self, gate_proj: jax.Array, up_proj: jax.Array):
        return scaled_swiglu(gate_proj, up_proj)


if __name__ == "__main__":
    key = jax.random.PRNGKey(0)
    kg, ku = jax.random.split(key)

    batch, seq, hidden = 2, 8, 32
    gate = jax.random.normal(kg, (batch, seq, hidden), dtype=jnp.float32)
    up = jax.random.normal(ku, (batch, seq, hidden), dtype=jnp.float32)

    mod = ScaledSwigluJax()
    out, scale = mod(gate, up)
    out = jax.block_until_ready(out)
    scale = jax.block_until_ready(scale)

    # Pure-JAX reference.
    ref_scale = jnp.max(jnp.abs(up), axis=-1, keepdims=True)
    ref_out = jax.nn.silu(gate) * (up / jnp.clip(ref_scale, 1e-12))

    assert out.shape == gate.shape and scale.shape == (batch, seq, 1)
    assert out.dtype == gate.dtype and scale.dtype == up.dtype
    assert jnp.allclose(out, ref_out, atol=1e-5, rtol=1e-5)
    assert jnp.allclose(scale, ref_scale, atol=1e-6, rtol=1e-6)

    print("KERNEL_OK")
</pallas_src>

<mosaic_0001>
module attributes {stable_mosaic.version = 11 : i64} {
  func.func @_scaled_swiglu_kernel(%arg0: i32, %arg1: memref<16x32xf32, #tpu.memory_space<vmem>>, %arg2: memref<16x32xf32, #tpu.memory_space<vmem>>, %arg3: memref<16x32xf32, #tpu.memory_space<vmem>>, %arg4: memref<16x1xf32, #tpu.memory_space<vmem>>) attributes {dimension_semantics = [#tpu.dimension_semantics<parallel>], iteration_bounds = array<i64: 1>, scalar_prefetch = 0 : i64, scratch_operands = 0 : i64, tpu.core_type = #tpu.core_type<tc>, window_params = [{transform_indices = @transform_0, window_bounds = array<i64: 16, 32>}, {transform_indices = @transform_1, window_bounds = array<i64: 16, 32>}, {transform_indices = @transform_2, window_bounds = array<i64: 16, 32>}, {transform_indices = @transform_3, window_bounds = array<i64: 16, 1>}]} {
    %c0 = arith.constant 0 : index
    %c0_0 = arith.constant 0 : index
    %0 = vector.load %arg2[%c0, %c0_0] : memref<16x32xf32, #tpu.memory_space<vmem>>, vector<16x32xf32>
    %1 = math.absf %0 : vector<16x32xf32>
    %cst = arith.constant dense<0xFF800000> : vector<16xf32>
    %2 = vector.multi_reduction <maximumf>, %1, %cst [1] : vector<16x32xf32> to vector<16xf32>
    %3 = vector.shape_cast %2 : vector<16xf32> to vector<16x1xf32>
    %cst_1 = arith.constant 9.99999996E-13 : f32
    %4 = vector.broadcast %cst_1 : f32 to vector<16x1xf32>
    %5 = arith.maximumf %3, %4 : vector<16x1xf32>
    %cst_2 = arith.constant 1.000000e+00 : f32
    %6 = vector.broadcast %cst_2 : f32 to vector<16x1xf32>
    %7 = arith.divf %6, %5 : vector<16x1xf32>
    %c0_3 = arith.constant 0 : index
    %c0_4 = arith.constant 0 : index
    %8 = vector.load %arg1[%c0_3, %c0_4] : memref<16x32xf32, #tpu.memory_space<vmem>>, vector<16x32xf32>
    %cst_5 = arith.constant 5.000000e-01 : f32
    %9 = vector.broadcast %cst_5 : f32 to vector<16x32xf32>
    %10 = arith.mulf %9, %8 : vector<16x32xf32>
    %11 = math.tanh %10 : vector<16x32xf32>
    %cst_6 = arith.constant 5.000000e-01 : f32
    %12 = vector.broadcast %cst_6 : f32 to vector<16x32xf32>
    %13 = arith.mulf %12, %11 : vector<16x32xf32>
    %cst_7 = arith.constant 5.000000e-01 : f32
    %14 = vector.broadcast %cst_7 : f32 to vector<16x32xf32>
    %15 = arith.addf %13, %14 : vector<16x32xf32>
    %16 = arith.mulf %8, %15 : vector<16x32xf32>
    %17 = vector.broadcast %7 : vector<16x1xf32> to vector<16x32xf32>
    %18 = arith.mulf %0, %17 : vector<16x32xf32>
    %19 = arith.mulf %16, %18 : vector<16x32xf32>
    %c0_8 = arith.constant 0 : index
    %c0_9 = arith.constant 0 : index
    %20 = vector.load %arg3[%c0_8, %c0_9] : memref<16x32xf32, #tpu.memory_space<vmem>>, vector<16x32xf32>
    tpu.vector_store %arg3[%c0_8, %c0_9], %19 {strides = array<i32>} : memref<16x32xf32, #tpu.memory_space<vmem>>, vector<16x32xf32>,
    %c0_10 = arith.constant 0 : index
    %c0_11 = arith.constant 0 : index
    %21 = vector.load %arg4[%c0_10, %c0_11] : memref<16x1xf32, #tpu.memory_space<vmem>>, vector<16x1xf32>
    tpu.vector_store %arg4[%c0_10, %c0_11], %3 {strides = array<i32>} : memref<16x1xf32, #tpu.memory_space<vmem>>, vector<16x1xf32>,
    return
  }
  func.func @transform_0(%arg0: i32) -> (i32, i32) {
    %c0_i32 = arith.constant 0 : i32
    %c0_i32_0 = arith.constant 0 : i32
    return %arg0, %c0_i32 : i32, i32
  }
  func.func @transform_1(%arg0: i32) -> (i32, i32) {
    %c0_i32 = arith.constant 0 : i32
    %c0_i32_0 = arith.constant 0 : i32
    return %arg0, %c0_i32 : i32, i32
  }
  func.func @transform_2(%arg0: i32) -> (i32, i32) {
    %c0_i32 = arith.constant 0 : i32
    %c0_i32_0 = arith.constant 0 : i32
    return %arg0, %c0_i32 : i32, i32
  }
  func.func @transform_3(%arg0: i32) -> (i32, i32) {
    %c0_i32 = arith.constant 0 : i32
    %c0_i32_0 = arith.constant 0 : i32
    return %arg0, %c0_i32 : i32, i32
  }
}

</mosaic_0001>

<llo_original>
// kernel: tpu_custom_call.1
$region0: #{tpu_custom_call.1}
  #allocation0 [shape = 'u32[]', space=smem, size = 0x4, offset = 0x4, fixed_abs, tag = 'smem constant byte address 0x4 - core index']
  #allocation1 [shape = 'u32[144,128]{1,0:T(1,128)}', space=vmem, size = 0x12000, scoped, tag = 'internal scratch']
  %s0 = inlined_call_operand.hbm [shape: f32[16,32], index: 0, kind: input, shape index: {}]
  %s1 = inlined_call_operand.hbm [shape: f32[16,32], index: 1, kind: input, shape index: {}]
  %s2 = inlined_call_operand.hbm [shape: f32[16,32], index: 2, kind: output, shape index: {0}]
  %s3 = inlined_call_operand.vmem [shape: f32[16,1], index: 3, kind: output, shape index: {1}]
  %4 = xla_tuple %s2, %s3
  %s5 = sld [smem:[#allocation0]]
  $region34: #{tpu_custom_call.1} parent=0
    _
  %s7 = ssub.s32 1, %s5
  %s8 = scalar_select 0, %s7, %s5
  $region1: #{tpu_custom_call.1} parent=0
    #allocation2 [shape = 'u8[8192]{0}', space=vmem, size = 0x2000, scoped, tag = 'input window, operand 0, single buffered']
    #allocation3 [shape = 's32[1]{0}', space=sflag, size = 0x4, scoped, tag = 'scoped memory for tpu_custom_call.1']
    #allocation4 [shape = 's32[1]{0}', space=sflag, size = 0x4, scoped, tag = 'scoped memory for tpu_custom_call.1']
    #allocation5 [shape = 'u8[8192]{0}', space=vmem, size = 0x2000, scoped, tag = 'input window, operand 1, single buffered']
    #allocation6 [shape = 's32[1]{0}', space=sflag, size = 0x4, scoped, tag = 'scoped memory for tpu_custom_call.1']
    #allocation7 [shape = 'u8[8192]{0}', space=vmem, size = 0x2000, scoped, tag = 'output window, operand 0, single buffered']
    %9 = vsyncpa [#allocation3], 0
    %10 = vsyncpa [#allocation6], 0
    %11 = vsyncpa [#allocation4], 0
    // Predicated region
    $region2: #{tpu_custom_call.1} parent=1 // pred_check
      _
    $region3: #{tpu_custom_call.1} parent=1 // pred_check_branch
      %13 = sbr.rel (0) target = $region5
    $region4: #{tpu_custom_call.1} parent=1 // pred_region
      %s15 = ssub.s32 256, 256
      %16 = vsyncadd [#allocation3], %s15
      %s17 = sshll.u32 [#allocation2], 4
      %s18 = int_to_ptr.vmem [resolvable:$true] %s17
      %23 = dma.hbm_to_vmem [thread:$0]  %s0, 256, %s18, [#allocation3], 128, 128, 8
    $region5: #{tpu_custom_call.1} parent=1 // pred_fallthru
      _
    // Predicated region
    $region6: #{tpu_custom_call.1} parent=1 // pred_check
      _
    $region7: #{tpu_custom_call.1} parent=1 // pred_check_branch
      %25 = sbr.rel (0) target = $region9
    $region8: #{tpu_custom_call.1} parent=1 // pred_region
      %s27 = ssub.s32 256, 256
      %28 = vsyncadd [#allocation6], %s27
      %s29 = sshll.u32 [#allocation5], 4
      %s30 = int_to_ptr.vmem [resolvable:$true] %s29
      %35 = dma.hbm_to_vmem [thread:$0]  %s1, 256, %s30, [#allocation6], 128, 128, 8
    $region9: #{tpu_custom_call.1} parent=1 // pred_fallthru
      _
    // Predicated region
    $region10: #{tpu_custom_call.1} parent=1 // pred_check
      _
    $region11: #{tpu_custom_call.1} parent=1 // pred_check_branch
      %37 = sbr.rel (0) target = $region13
    $region12: #{tpu_custom_call.1} parent=1 // pred_region
      %38 = dma.done [#allocation3], 256
    $region13: #{tpu_custom_call.1} parent=1 // pred_fallthru
      _
    // Predicated region
    $region14: #{tpu_custom_call.1} parent=1 // pred_check
      _
    $region15: #{tpu_custom_call.1} parent=1 // pred_check_branch
      %40 = sbr.rel (0) target = $region17
    $region16: #{tpu_custom_call.1} parent=1 // pred_region
      %41 = dma.done [#allocation6], 256
    $region17: #{tpu_custom_call.1} parent=1 // pred_fallthru
      _
    %v42 = vld [vmem:[#allocation5] sm:$0xff]
    %v43 = vld [vmem:[#allocation5 + $0x8] sm:$0xff]
    %v44 = vand.u32 2147483647, %v42
    %v45 = vand.u32 2147483647, %v43
    %vm46 = vcmask 261120
    %v47 = vsel %vm46, %v44, -inf
    %48 = vmax.xlane.f32.xlu0 %v47
    %v49 = vpop.xlane.xlu0 %48
    %v50 = vsel %vm46, %v45, -inf
    %51 = vmax.xlane.f32.xlu0 %v50
    %v52 = vpop.xlane.xlu0 %51
    %v53 = vmax.f32 %v49, 1e-12
    %v54 = vmax.f32 %v52, 1e-12
    %v55 = vrcp.pop %v53
    %v56 = vmul.f32 1.0, %v55
    %v57 = vrcp.pop %v54
    %v58 = vmul.f32 1.0, %v57
    %v59 = vld [vmem:[#allocation2] sm:$0xff]
    %v60 = vld [vmem:[#allocation2 + $0x8] sm:$0xff]
    %v61 = vmul.f32 %v59, 0.5
    %v62 = vmul.f32 %v60, 0.5
    %v63 = vtanh.pop %v61
    %v64 = vtanh.pop %v62
    %v65 = vmul.f32 %v63, 0.5
    %v66 = vmul.f32 %v64, 0.5
    %v67 = vadd.f32 %v65, 0.5
    %v68 = vadd.f32 %v66, 0.5
    %v69 = vmul.f32 %v59, %v67
    %v70 = vmul.f32 %v60, %v68
    %v71 = vmul.f32 %v42, %v56
    %v72 = vmul.f32 %v43, %v58
    %v73 = vmul.f32 %v69, %v71
    %v74 = vmul.f32 %v70, %v72
    %75 = vst.msk [vmem:[#allocation7] sm:$0xff] %vm46, %v73
    %76 = vst.msk [vmem:[#allocation7 + $0x8] sm:$0xff] %vm46, %v74
    %vm77 = vcmask 7168
    %78 = vst.msk [vmem:[%s3] sm:$0xff] %vm77, %v49
    %79 = vst.msk [vmem:[%s3 + $0x8] sm:$0xff] %vm77, %v52
    // Predicated region
    $region18: #{tpu_custom_call.1} parent=1 // pred_check
      _
    $region19: #{tpu_custom_call.1} parent=1 // pred_check_branch
      %81 = sbr.rel (0) target = $region21
    $region20: #{tpu_custom_call.1} parent=1 // pred_region
      %s83 = ssub.s32 256, 256
      %84 = vsyncadd [#allocation4], %s83
      %s85 = sshll.u32 [#allocation7], 4
      %s86 = int_to_ptr.vmem [resolvable:$true] %s85
      %91 = dma.vmem_to_hbm [thread:$0]  %s86, 256, %s2, [#allocation4], 128, 128, 8
    $region21: #{tpu_custom_call.1} parent=1 // pred_fallthru
      _
    // Predicated region
    $region22: #{tpu_custom_call.1} parent=1 // pred_check
      _
    $region23: #{tpu_custom_call.1} parent=1 // pred_check_branch
      %93 = sbr.rel (0) target = $region25
    $region24: #{tpu_custom_call.1} parent=1 // pred_region
      _
    $region25: #{tpu_custom_call.1} parent=1 // pred_fallthru
      _
    // Predicated region
    $region26: #{tpu_custom_call.1} parent=1 // pred_check
      _
    $region27: #{tpu_custom_call.1} parent=1 // pred_check_branch
      %95 = sbr.rel (0) target = $region29
    $region28: #{tpu_custom_call.1} parent=1 // pred_region
      %96 = dma.done [#allocation4], 256
    $region29: #{tpu_custom_call.1} parent=1 // pred_fallthru
      _
    // Predicated region
    $region30: #{tpu_custom_call.1} parent=1 // pred_check
      _
    $region31: #{tpu_custom_call.1} parent=1 // pred_check_branch
      %98 = sbr.rel (0) target = $region33
    $region32: #{tpu_custom_call.1} parent=1 // pred_region
      _
    $region33: #{tpu_custom_call.1} parent=1 // pred_fallthru
      _
    %99 = vsyncpa [#allocation3], 1
    %100 = vsyncpa [#allocation6], 1
    %101 = vsyncpa [#allocation4], 1

</llo_original>
